<compile_context>
chip_gen: v7x
topology: tpu7x:2x2x1
jax: 0.10.0
libtpu: 0.0.40
codegen_flags: <defaults>
</compile_context>

<pallas_src>
import jax
import jax.numpy as jnp
from jax.experimental import pallas as pl
from jax.experimental.pallas import tpu as pltpu

LN_EPS = 1e-5


def _double_q_integral_kernel(
    obs_ref,   # (TB, A)
    tw1_ref,   # (A, F)   trunk linear 1 weight
    tb1_ref,   # (1, F)   trunk linear 1 bias
    tw2_ref,   # (F, F)   trunk linear 2 weight
    tb2_ref,   # (1, F)   trunk linear 2 bias
    lnw_ref,   # (1, F)   layernorm gamma
    lnb_ref,   # (1, F)   layernorm beta
    w1_ref,    # (F, 2H)  fused head layer-1 weight (heads concatenated on lanes)
    b1_ref,    # (1, 2H)
    w2_ref,    # (2H, 2H) fused head layer-2 weight (block-diagonal)
    b2_ref,    # (1, 2H)
    w3_ref,    # (2H, 2)  fused head output weight (block-structured)
    b3_ref,    # (1, 2)
    out_ref,   # (TB, 2)  column 0 = I1, column 1 = I2
):
    x = obs_ref[...]
    if x.dtype != jnp.float32:          # avoid a redundant VPU pass when already f32
        x = x.astype(jnp.float32)

    # ---- trunk: Linear -> ReLU -> Linear -> LayerNorm -> Tanh ----
    h = jnp.dot(x, tw1_ref[...], preferred_element_type=jnp.float32) + tb1_ref[...]
    h = jnp.maximum(h, 0.0)
    h = jnp.dot(h, tw2_ref[...], preferred_element_type=jnp.float32) + tb2_ref[...]
    mu = jnp.mean(h, axis=-1, keepdims=True)
    xc = h - mu
    var = jnp.mean(xc * xc, axis=-1, keepdims=True)
    h = xc * jax.lax.rsqrt(var + LN_EPS)
    h = h * lnw_ref[...] + lnb_ref[...]
    h = jnp.tanh(h)

    # ---- fused I1/I2 heads (3 lane-dense matmuls instead of 6 tiny ones) ----
    z = jnp.dot(h, w1_ref[...], preferred_element_type=jnp.float32) + b1_ref[...]
    z = jnp.maximum(z, 0.0)
    z = jnp.dot(z, w2_ref[...], preferred_element_type=jnp.float32) + b2_ref[...]
    z = jnp.maximum(z, 0.0)
    y = jnp.dot(z, w3_ref[...], preferred_element_type=jnp.float32) + b3_ref[...]
    out_ref[...] = y.astype(out_ref.dtype)


def double_q_integral_forward(obs, params, *, tile_b=None):
    """obs: (B, action_dim) float32. Returns (i1, i2), each (B, 1) float32."""
    B, A = obs.shape
    tw1, tb1, tw2, tb2, lnw, lnb, heads = params
    F = tw1.shape[1]
    H = heads[0][0].shape[1]
    n_heads = len(heads)          # 2
    NH = n_heads * H

    # ---- pack the heads into lane-dense fused weights (exact: zero cross blocks) ----
    w1_cat = jnp.concatenate([h[0] for h in heads], axis=1)                  # (F, 2H)
    b1_cat = jnp.concatenate([h[1] for h in heads])[None, :]                 # (1, 2H)
    w2_bd = jax.scipy.linalg.block_diag(*[h[2] for h in heads])              # (2H, 2H)
    b2_cat = jnp.concatenate([h[3] for h in heads])[None, :]                 # (1, 2H)
    w3_bd = jax.scipy.linalg.block_diag(*[h[4] for h in heads])              # (2H, 2)
    b3_cat = jnp.concatenate([h[5] for h in heads])[None, :]                 # (1, 2)

    # ---- batch tiling: amortize per-step overhead, stay well inside VMEM ----
    if tile_b is None:
        tile_b = min(B, 512)
    assert B % tile_b == 0, "B must be divisible by tile_b"
    assert tile_b % 8 == 0 or tile_b == B, "tile_b must be a multiple of 8 (f32 sublane)"

    def full(shape):
        return pl.BlockSpec(shape, lambda i, _s=shape: tuple(0 for _ in _s))

    out_spec = pl.BlockSpec((tile_b, n_heads), lambda i: (i, 0))
    out_sd = jax.ShapeDtypeStruct((B, n_heads), jnp.float32)

    grid_spec = pltpu.PrefetchScalarGridSpec(
        num_scalar_prefetch=0,
        grid=(B // tile_b,),
        in_specs=[
            pl.BlockSpec((tile_b, A), lambda i: (i, 0)),   # obs (only streamed input)
            full((A, F)), full((1, F)),
            full((F, F)), full((1, F)),
            full((1, F)), full((1, F)),
            full((F, NH)), full((1, NH)),
            full((NH, NH)), full((1, NH)),
            full((NH, n_heads)), full((1, n_heads)),
        ],
        out_specs=out_spec,
    )

    # Advisory cost estimate so XLA can overlap this small kernel with neighbors.
    flops = 2 * B * (A * F + F * F + F * NH + NH * NH + NH * n_heads)
    transcendentals = B * F + B                      # tanh + rsqrt
    weight_bytes = 4 * (tw1.size + tb1.size + tw2.size + tb2.size + lnw.size + lnb.size
                        + w1_cat.size + b1_cat.size + w2_bd.size + b2_cat.size
                        + w3_bd.size + b3_cat.size)
    bytes_accessed = 4 * obs.size + weight_bytes + 4 * B * n_heads
    cost = pl.CostEstimate(flops=int(flops),
                           transcendentals=int(transcendentals),
                           bytes_accessed=int(bytes_accessed))

    out = pl.pallas_call(
        _double_q_integral_kernel,
        out_shape=out_sd,
        grid_spec=grid_spec,
        compiler_params=pltpu.CompilerParams(
            dimension_semantics=("parallel",),      # batch tiles are independent
            vmem_limit_bytes=32 * 1024 * 1024,      # safe on v5e/v6e/v7x
        ),
        cost_estimate=cost,
    )(obs, tw1, tb1, tw2, tb2, lnw, lnb,
      w1_cat, b1_cat, w2_bd, b2_cat, w3_bd, b3_cat)

    i1 = out[:, 0:1]
    i2 = out[:, 1:2]
    return i1, i2


def init_params(key, action_dim, feature_dim, hidden_dim, n_heads=2):
    """Deterministic synthetic init (stand-in for utils.weight_init)."""
    ks = jax.random.split(key, 4 + 6 * n_heads)

    def lin(k, fan_in, fan_out):
        scale = 1.0 / jnp.sqrt(jnp.float32(fan_in))
        return jax.random.normal(k, (fan_in, fan_out), jnp.float32) * scale

    tw1 = lin(ks[0], action_dim, feature_dim)
    tb1 = jax.random.normal(ks[1], (1, feature_dim), jnp.float32) * 0.01
    tw2 = lin(ks[2], feature_dim, feature_dim)
    tb2 = jax.random.normal(ks[3], (1, feature_dim), jnp.float32) * 0.01
    lnw = jnp.ones((1, feature_dim), jnp.float32)
    lnb = jnp.zeros((1, feature_dim), jnp.float32)

    heads = []
    idx = 4
    for _ in range(n_heads):
        w1 = lin(ks[idx], feature_dim, hidden_dim)
        b1 = jax.random.normal(ks[idx + 1], (hidden_dim,), jnp.float32) * 0.01
        w2 = lin(ks[idx + 2], hidden_dim, hidden_dim)
        b2 = jax.random.normal(ks[idx + 3], (hidden_dim,), jnp.float32) * 0.01
        w3 = lin(ks[idx + 4], hidden_dim, 1)
        b3 = jax.random.normal(ks[idx + 5], (1,), jnp.float32) * 0.01
        heads.append((w1, b1, w2, b2, w3, b3))
        idx += 6

    return (tw1, tb1, tw2, tb2, lnw, lnb, tuple(heads))


def reference_forward(obs, params):
    tw1, tb1, tw2, tb2, lnw, lnb, heads = params
    h = jnp.maximum(obs @ tw1 + tb1, 0.0)
    h = h @ tw2 + tb2
    mu = jnp.mean(h, axis=-1, keepdims=True)
    var = jnp.mean((h - mu) ** 2, axis=-1, keepdims=True)
    h = (h - mu) / jnp.sqrt(var + LN_EPS) * lnw + lnb
    h = jnp.tanh(h)
    outs = []
    for (w1, b1, w2, b2, w3, b3) in heads:
        z = jnp.maximum(h @ w1 + b1[None, :], 0.0)
        z = jnp.maximum(z @ w2 + b2[None, :], 0.0)
        outs.append(z @ w3 + b3[None, :])
    return tuple(outs)


if __name__ == "__main__":
    B, action_dim, feature_dim, hidden_dim = 16, 8, 64, 32

    key = jax.random.PRNGKey(0)
    k_obs, k_par = jax.random.split(key)
    obs = jax.random.normal(k_obs, (B, action_dim), jnp.float32)
    params = init_params(k_par, action_dim, feature_dim, hidden_dim)

    i1, i2 = double_q_integral_forward(obs, params)
    i1, i2 = jax.block_until_ready((i1, i2))

    r1, r2 = reference_forward(obs, params)
    assert i1.shape == (B, 1) and i2.shape == (B, 1)
    assert jnp.allclose(i1, r1, atol=1e-4, rtol=1e-4), (i1, r1)
    assert jnp.allclose(i2, r2, atol=1e-4, rtol=1e-4), (i2, r2)

    print("KERNEL_OK")
</pallas_src>

<mosaic_0001>
module attributes {stable_mosaic.version = 11 : i64} {
  func.func @_double_q_integral_kernel(%arg0: i32, %arg1: memref<16x8xf32, #tpu.memory_space<vmem>>, %arg2: memref<8x64xf32, #tpu.memory_space<vmem>>, %arg3: memref<1x64xf32, #tpu.memory_space<vmem>>, %arg4: memref<64x64xf32, #tpu.memory_space<vmem>>, %arg5: memref<1x64xf32, #tpu.memory_space<vmem>>, %arg6: memref<1x64xf32, #tpu.memory_space<vmem>>, %arg7: memref<1x64xf32, #tpu.memory_space<vmem>>, %arg8: memref<64x64xf32, #tpu.memory_space<vmem>>, %arg9: memref<1x64xf32, #tpu.memory_space<vmem>>, %arg10: memref<64x64xf32, #tpu.memory_space<vmem>>, %arg11: memref<1x64xf32, #tpu.memory_space<vmem>>, %arg12: memref<64x2xf32, #tpu.memory_space<vmem>>, %arg13: memref<1x2xf32, #tpu.memory_space<vmem>>, %arg14: memref<16x2xf32, #tpu.memory_space<vmem>>) attributes {dimension_semantics = [#tpu.dimension_semantics<parallel>], iteration_bounds = array<i64: 1>, scalar_prefetch = 0 : i64, scratch_operands = 0 : i64, tpu.core_type = #tpu.core_type<tc>, window_params = [{transform_indices = @transform_0, window_bounds = array<i64: 16, 8>}, {pipeline_mode = #tpu.pipeline_mode<synchronous>, transform_indices = @transform_1, window_bounds = array<i64: 8, 64>}, {pipeline_mode = #tpu.pipeline_mode<synchronous>, transform_indices = @transform_2, window_bounds = array<i64: 1, 64>}, {pipeline_mode = #tpu.pipeline_mode<synchronous>, transform_indices = @transform_3, window_bounds = array<i64: 64, 64>}, {pipeline_mode = #tpu.pipeline_mode<synchronous>, transform_indices = @transform_4, window_bounds = array<i64: 1, 64>}, {pipeline_mode = #tpu.pipeline_mode<synchronous>, transform_indices = @transform_5, window_bounds = array<i64: 1, 64>}, {pipeline_mode = #tpu.pipeline_mode<synchronous>, transform_indices = @transform_6, window_bounds = array<i64: 1, 64>}, {pipeline_mode = #tpu.pipeline_mode<synchronous>, transform_indices = @transform_7, window_bounds = array<i64: 64, 64>}, {pipeline_mode = #tpu.pipeline_mode<synchronous>, transform_indices = @transform_8, window_bounds = array<i64: 1, 64>}, {pipeline_mode = #tpu.pipeline_mode<synchronous>, transform_indices = @transform_9, window_bounds = array<i64: 64, 64>}, {pipeline_mode = #tpu.pipeline_mode<synchronous>, transform_indices = @transform_10, window_bounds = array<i64: 1, 64>}, {pipeline_mode = #tpu.pipeline_mode<synchronous>, transform_indices = @transform_11, window_bounds = array<i64: 64, 2>}, {pipeline_mode = #tpu.pipeline_mode<synchronous>, transform_indices = @transform_12, window_bounds = array<i64: 1, 2>}, {transform_indices = @transform_13, window_bounds = array<i64: 16, 2>}]} {
    %c0 = arith.constant 0 : index
    %c0_0 = arith.constant 0 : index
    %0 = vector.load %arg1[%c0, %c0_0] : memref<16x8xf32, #tpu.memory_space<vmem>>, vector<16x8xf32>
    %c0_1 = arith.constant 0 : index
    %c0_2 = arith.constant 0 : index
    %1 = vector.load %arg2[%c0_1, %c0_2] : memref<8x64xf32, #tpu.memory_space<vmem>>, vector<8x64xf32>
    %cst = arith.constant dense<0.000000e+00> : vector<16x64xf32>
    %2 = tpu.matmul %0, %1, %cst {dimension_numbers = #tpu.dot_dimension_numbers<[1], [0], [0], [1], [0, 0, 1, 1], [], []>} : vector<16x8xf32>, vector<8x64xf32>, vector<16x64xf32> -> vector<16x64xf32>
    %c0_3 = arith.constant 0 : index
    %c0_4 = arith.constant 0 : index
    %3 = vector.load %arg3[%c0_3, %c0_4] : memref<1x64xf32, #tpu.memory_space<vmem>>, vector<1x64xf32>
    %4 = vector.broadcast %3 : vector<1x64xf32> to vector<16x64xf32>
    %5 = arith.addf %2, %4 : vector<16x64xf32>
    %cst_5 = arith.constant 0.000000e+00 : f32
    %6 = vector.broadcast %cst_5 : f32 to vector<16x64xf32>
    %7 = arith.maximumf %5, %6 : vector<16x64xf32>
    %c0_6 = arith.constant 0 : index
    %c0_7 = arith.constant 0 : index
    %8 = vector.load %arg4[%c0_6, %c0_7] : memref<64x64xf32, #tpu.memory_space<vmem>>, vector<64x64xf32>
    %cst_8 = arith.constant dense<0.000000e+00> : vector<16x64xf32>
    %9 = tpu.matmul %7, %8, %cst_8 {dimension_numbers = #tpu.dot_dimension_numbers<[1], [0], [0], [1], [0, 0, 1, 1], [], []>} : vector<16x64xf32>, vector<64x64xf32>, vector<16x64xf32> -> vector<16x64xf32>
    %c0_9 = arith.constant 0 : index
    %c0_10 = arith.constant 0 : index
    %10 = vector.load %arg5[%c0_9, %c0_10] : memref<1x64xf32, #tpu.memory_space<vmem>>, vector<1x64xf32>
    %11 = vector.broadcast %10 : vector<1x64xf32> to vector<16x64xf32>
    %12 = arith.addf %9, %11 : vector<16x64xf32>
    %cst_11 = arith.constant dense<0.000000e+00> : vector<16xf32>
    %13 = vector.multi_reduction <add>, %12, %cst_11 [1] : vector<16x64xf32> to vector<16xf32>
    %14 = vector.shape_cast %13 : vector<16xf32> to vector<16x1xf32>
    %cst_12 = arith.constant 6.400000e+01 : f32
    %15 = vector.broadcast %cst_12 : f32 to vector<16x1xf32>
    %16 = arith.divf %14, %15 : vector<16x1xf32>
    %17 = vector.broadcast %16 : vector<16x1xf32> to vector<16x64xf32>
    %18 = arith.subf %12, %17 : vector<16x64xf32>
    %19 = arith.mulf %18, %18 : vector<16x64xf32>
    %cst_13 = arith.constant dense<0.000000e+00> : vector<16xf32>
    %20 = vector.multi_reduction <add>, %19, %cst_13 [1] : vector<16x64xf32> to vector<16xf32>
    %21 = vector.shape_cast %20 : vector<16xf32> to vector<16x1xf32>
    %cst_14 = arith.constant 6.400000e+01 : f32
    %22 = vector.broadcast %cst_14 : f32 to vector<16x1xf32>
    %23 = arith.divf %21, %22 : vector<16x1xf32>
    %cst_15 = arith.constant 9.99999974E-6 : f32
    %24 = vector.broadcast %cst_15 : f32 to vector<16x1xf32>
    %25 = arith.addf %23, %24 : vector<16x1xf32>
    %26 = math.rsqrt %25 : vector<16x1xf32>
    %27 = vector.broadcast %26 : vector<16x1xf32> to vector<16x64xf32>
    %28 = arith.mulf %18, %27 : vector<16x64xf32>
    %c0_16 = arith.constant 0 : index
    %c0_17 = arith.constant 0 : index
    %29 = vector.load %arg6[%c0_16, %c0_17] : memref<1x64xf32, #tpu.memory_space<vmem>>, vector<1x64xf32>
    %30 = vector.broadcast %29 : vector<1x64xf32> to vector<16x64xf32>
    %31 = arith.mulf %28, %30 : vector<16x64xf32>
    %c0_18 = arith.constant 0 : index
    %c0_19 = arith.constant 0 : index
    %32 = vector.load %arg7[%c0_18, %c0_19] : memref<1x64xf32, #tpu.memory_space<vmem>>, vector<1x64xf32>
    %33 = vector.broadcast %32 : vector<1x64xf32> to vector<16x64xf32>
    %34 = arith.addf %31, %33 : vector<16x64xf32>
    %35 = math.tanh %34 : vector<16x64xf32>
    %c0_20 = arith.constant 0 : index
    %c0_21 = arith.constant 0 : index
    %36 = vector.load %arg8[%c0_20, %c0_21] : memref<64x64xf32, #tpu.memory_space<vmem>>, vector<64x64xf32>
    %cst_22 = arith.constant dense<0.000000e+00> : vector<16x64xf32>
    %37 = tpu.matmul %35, %36, %cst_22 {dimension_numbers = #tpu.dot_dimension_numbers<[1], [0], [0], [1], [0, 0, 1, 1], [], []>} : vector<16x64xf32>, vector<64x64xf32>, vector<16x64xf32> -> vector<16x64xf32>
    %c0_23 = arith.constant 0 : index
    %c0_24 = arith.constant 0 : index
    %38 = vector.load %arg9[%c0_23, %c0_24] : memref<1x64xf32, #tpu.memory_space<vmem>>, vector<1x64xf32>
    %39 = vector.broadcast %38 : vector<1x64xf32> to vector<16x64xf32>
    %40 = arith.addf %37, %39 : vector<16x64xf32>
    %cst_25 = arith.constant 0.000000e+00 : f32
    %41 = vector.broadcast %cst_25 : f32 to vector<16x64xf32>
    %42 = arith.maximumf %40, %41 : vector<16x64xf32>
    %c0_26 = arith.constant 0 : index
    %c0_27 = arith.constant 0 : index
    %43 = vector.load %arg10[%c0_26, %c0_27] : memref<64x64xf32, #tpu.memory_space<vmem>>, vector<64x64xf32>
    %cst_28 = arith.constant dense<0.000000e+00> : vector<16x64xf32>
    %44 = tpu.matmul %42, %43, %cst_28 {dimension_numbers = #tpu.dot_dimension_numbers<[1], [0], [0], [1], [0, 0, 1, 1], [], []>} : vector<16x64xf32>, vector<64x64xf32>, vector<16x64xf32> -> vector<16x64xf32>
    %c0_29 = arith.constant 0 : index
    %c0_30 = arith.constant 0 : index
    %45 = vector.load %arg11[%c0_29, %c0_30] : memref<1x64xf32, #tpu.memory_space<vmem>>, vector<1x64xf32>
    %46 = vector.broadcast %45 : vector<1x64xf32> to vector<16x64xf32>
    %47 = arith.addf %44, %46 : vector<16x64xf32>
    %cst_31 = arith.constant 0.000000e+00 : f32
    %48 = vector.broadcast %cst_31 : f32 to vector<16x64xf32>
    %49 = arith.maximumf %47, %48 : vector<16x64xf32>
    %c0_32 = arith.constant 0 : index
    %c0_33 = arith.constant 0 : index
    %50 = vector.load %arg12[%c0_32, %c0_33] : memref<64x2xf32, #tpu.memory_space<vmem>>, vector<64x2xf32>
    %cst_34 = arith.constant dense<0.000000e+00> : vector<16x2xf32>
    %51 = tpu.matmul %49, %50, %cst_34 {dimension_numbers = #tpu.dot_dimension_numbers<[1], [0], [0], [1], [0, 0, 1, 1], [], []>} : vector<16x64xf32>, vector<64x2xf32>, vector<16x2xf32> -> vector<16x2xf32>
    %c0_35 = arith.constant 0 : index
    %c0_36 = arith.constant 0 : index
    %52 = vector.load %arg13[%c0_35, %c0_36] : memref<1x2xf32, #tpu.memory_space<vmem>>, vector<1x2xf32>
    %53 = vector.broadcast %52 : vector<1x2xf32> to vector<16x2xf32>
    %54 = arith.addf %51, %53 : vector<16x2xf32>
    %c0_37 = arith.constant 0 : index
    %c0_38 = arith.constant 0 : index
    %55 = vector.load %arg14[%c0_37, %c0_38] : memref<16x2xf32, #tpu.memory_space<vmem>>, vector<16x2xf32>
    tpu.vector_store %arg14[%c0_37, %c0_38], %54 {strides = array<i32>} : memref<16x2xf32, #tpu.memory_space<vmem>>, vector<16x2xf32>,
    return
  }
  func.func @transform_0(%arg0: i32) -> (i32, i32) {
    %c0_i32 = arith.constant 0 : i32
    %c0_i32_0 = arith.constant 0 : i32
    return %arg0, %c0_i32 : i32, i32
  }
  func.func @transform_1(%arg0: i32) -> (i32, i32) {
    %c0_i32 = arith.constant 0 : i32
    %c0_i32_0 = arith.constant 0 : i32
    %c0_i32_1 = arith.constant 0 : i32
    return %c0_i32, %c0_i32_0 : i32, i32
  }
  func.func @transform_2(%arg0: i32) -> (i32, i32) {
    %c0_i32 = arith.constant 0 : i32
    %c0_i32_0 = arith.constant 0 : i32
    %c0_i32_1 = arith.constant 0 : i32
    return %c0_i32, %c0_i32_0 : i32, i32
  }
  func.func @transform_3(%arg0: i32) -> (i32, i32) {
    %c0_i32 = arith.constant 0 : i32
    %c0_i32_0 = arith.constant 0 : i32
    %c0_i32_1 = arith.constant 0 : i32
    return %c0_i32, %c0_i32_0 : i32, i32
  }
  func.func @transform_4(%arg0: i32) -> (i32, i32) {
    %c0_i32 = arith.constant 0 : i32
    %c0_i32_0 = arith.constant 0 : i32
    %c0_i32_1 = arith.constant 0 : i32
    return %c0_i32, %c0_i32_0 : i32, i32
  }
  func.func @transform_5(%arg0: i32) -> (i32, i32) {
    %c0_i32 = arith.constant 0 : i32
    %c0_i32_0 = arith.constant 0 : i32
    %c0_i32_1 = arith.constant 0 : i32
    return %c0_i32, %c0_i32_0 : i32, i32
  }
  func.func @transform_6(%arg0: i32) -> (i32, i32) {
    %c0_i32 = arith.constant 0 : i32
    %c0_i32_0 = arith.constant 0 : i32
    %c0_i32_1 = arith.constant 0 : i32
    return %c0_i32, %c0_i32_0 : i32, i32
  }
  func.func @transform_7(%arg0: i32) -> (i32, i32) {
    %c0_i32 = arith.constant 0 : i32
    %c0_i32_0 = arith.constant 0 : i32
    %c0_i32_1 = arith.constant 0 : i32
    return %c0_i32, %c0_i32_0 : i32, i32
  }
  func.func @transform_8(%arg0: i32) -> (i32, i32) {
    %c0_i32 = arith.constant 0 : i32
    %c0_i32_0 = arith.constant 0 : i32
    %c0_i32_1 = arith.constant 0 : i32
    return %c0_i32, %c0_i32_0 : i32, i32
  }
  func.func @transform_9(%arg0: i32) -> (i32, i32) {
    %c0_i32 = arith.constant 0 : i32
    %c0_i32_0 = arith.constant 0 : i32
    %c0_i32_1 = arith.constant 0 : i32
    return %c0_i32, %c0_i32_0 : i32, i32
  }
  func.func @transform_10(%arg0: i32) -> (i32, i32) {
    %c0_i32 = arith.constant 0 : i32
    %c0_i32_0 = arith.constant 0 : i32
    %c0_i32_1 = arith.constant 0 : i32
    return %c0_i32, %c0_i32_0 : i32, i32
  }
  func.func @transform_11(%arg0: i32) -> (i32, i32) {
    %c0_i32 = arith.constant 0 : i32
    %c0_i32_0 = arith.constant 0 : i32
    %c0_i32_1 = arith.constant 0 : i32
    return %c0_i32, %c0_i32_0 : i32, i32
  }
  func.func @transform_12(%arg0: i32) -> (i32, i32) {
    %c0_i32 = arith.constant 0 : i32
    %c0_i32_0 = arith.constant 0 : i32
    %c0_i32_1 = arith.constant 0 : i32
    return %c0_i32, %c0_i32_0 : i32, i32
  }
  func.func @transform_13(%arg0: i32) -> (i32, i32) {
    %c0_i32 = arith.constant 0 : i32
    %c0_i32_0 = arith.constant 0 : i32
    return %arg0, %c0_i32 : i32, i32
  }
}

</mosaic_0001>

<llo_original>
// kernel: tpu_custom_call.1
$region0: #{tpu_custom_call.1}
  #allocation0 [shape = 'u32[]', space=smem, size = 0x4, offset = 0x4, fixed_abs, tag = 'smem constant byte address 0x4 - core index']
  #allocation1 [shape = 'u32[144,128]{1,0:T(1,128)}', space=vmem, size = 0x12000, scoped, tag = 'internal scratch']
  %s0 = inlined_call_operand.vmem [shape: f32[16,8], index: 0, kind: input, shape index: {}]
  %s1 = inlined_call_operand.vmem [shape: f32[8,64], index: 1, kind: input, shape index: {}]
  %s2 = inlined_call_operand.vmem [shape: f32[1,64], index: 2, kind: input, shape index: {}]
  %s3 = inlined_call_operand.vmem [shape: f32[64,64], index: 3, kind: input, shape index: {}]
  %s4 = inlined_call_operand.vmem [shape: f32[1,64], index: 4, kind: input, shape index: {}]
  %s5 = inlined_call_operand.vmem [shape: f32[1,64], index: 5, kind: input, shape index: {}]
  %s6 = inlined_call_operand.vmem [shape: f32[1,64], index: 6, kind: input, shape index: {}]
  %s7 = inlined_call_operand.hbm [shape: f32[64,64], index: 7, kind: input, shape index: {}]
  %s8 = inlined_call_operand.vmem [shape: f32[1,64], index: 8, kind: input, shape index: {}]
  %s9 = inlined_call_operand.hbm [shape: f32[64,64], index: 9, kind: input, shape index: {}]
  %s10 = inlined_call_operand.vmem [shape: f32[1,64], index: 10, kind: input, shape index: {}]
  %s11 = inlined_call_operand.vmem [shape: f32[64,2], index: 11, kind: input, shape index: {}]
  %s12 = inlined_call_operand.vmem [shape: f32[1,2], index: 12, kind: input, shape index: {}]
  %s13 = inlined_call_operand.vmem [shape: f32[16,2], index: 13, kind: output, shape index: {}]
  %s14 = sld [smem:[#allocation0]]
  $region70: #{tpu_custom_call.1} parent=0
    _
  %s16 = ssub.s32 1, %s14
  %s17 = scalar_select 0, %s16, %s14
  $region1: #{tpu_custom_call.1} parent=0
    #allocation2 [shape = 'u8[32768]{0}', space=vmem, size = 0x8000, scoped, tag = 'input window, operand 7, single buffered']
    #allocation3 [shape = 's32[1]{0}', space=sflag, size = 0x4, scoped, tag = 'scoped memory for tpu_custom_call.1']
    #allocation4 [shape = 'u8[32768]{0}', space=vmem, size = 0x8000, scoped, tag = 'input window, operand 9, single buffered']
    #allocation5 [shape = 's32[1]{0}', space=sflag, size = 0x4, scoped, tag = 'scoped memory for tpu_custom_call.1']
    %18 = vsyncpa [#allocation3], 0
    %19 = vsyncpa [#allocation5], 0
    // Predicated region
    $region2: #{tpu_custom_call.1} parent=1 // pred_check
      _
    $region3: #{tpu_custom_call.1} parent=1 // pred_check_branch
      %21 = sbr.rel (0) target = $region5
    $region4: #{tpu_custom_call.1} parent=1 // pred_region
      _
    $region5: #{tpu_custom_call.1} parent=1 // pred_fallthru
      _
    // Predicated region
    $region6: #{tpu_custom_call.1} parent=1 // pred_check
      _
    $region7: #{tpu_custom_call.1} parent=1 // pred_check_branch
      %23 = sbr.rel (0) target = $region9
    $region8: #{tpu_custom_call.1} parent=1 // pred_region
      _
    $region9: #{tpu_custom_call.1} parent=1 // pred_fallthru
      _
    // Predicated region
    $region10: #{tpu_custom_call.1} parent=1 // pred_check
      _
    $region11: #{tpu_custom_call.1} parent=1 // pred_check_branch
      %25 = sbr.rel (0) target = $region13
    $region12: #{tpu_custom_call.1} parent=1 // pred_region
      _
    $region13: #{tpu_custom_call.1} parent=1 // pred_fallthru
      _
    // Predicated region
    $region14: #{tpu_custom_call.1} parent=1 // pred_check
      _
    $region15: #{tpu_custom_call.1} parent=1 // pred_check_branch
      %27 = sbr.rel (0) target = $region17
    $region16: #{tpu_custom_call.1} parent=1 // pred_region
      _
    $region17: #{tpu_custom_call.1} parent=1 // pred_fallthru
      _
    // Predicated region
    $region18: #{tpu_custom_call.1} parent=1 // pred_check
      _
    $region19: #{tpu_custom_call.1} parent=1 // pred_check_branch
      %29 = sbr.rel (0) target = $region21
    $region20: #{tpu_custom_call.1} parent=1 // pred_region
      _
    $region21: #{tpu_custom_call.1} parent=1 // pred_fallthru
      _
    // Predicated region
    $region22: #{tpu_custom_call.1} parent=1 // pred_check
      _
    $region23: #{tpu_custom_call.1} parent=1 // pred_check_branch
      %31 = sbr.rel (0) target = $region25
    $region24: #{tpu_custom_call.1} parent=1 // pred_region
      _
    $region25: #{tpu_custom_call.1} parent=1 // pred_fallthru
      _
    // Predicated region
    $region26: #{tpu_custom_call.1} parent=1 // pred_check
      _
    $region27: #{tpu_custom_call.1} parent=1 // pred_check_branch
      %33 = sbr.rel (0) target = $region29
    $region28: #{tpu_custom_call.1} parent=1 // pred_region
      _
    $region29: #{tpu_custom_call.1} parent=1 // pred_fallthru
      _
    // Predicated region
    $region30: #{tpu_custom_call.1} parent=1 // pred_check
      _
    $region31: #{tpu_custom_call.1} parent=1 // pred_check_branch
      %35 = sbr.rel (0) target = $region33
    $region32: #{tpu_custom_call.1} parent=1 // pred_region
      %s37 = ssub.s32 1024, 1024
      %38 = vsyncadd [#allocation3], %s37
      %s39 = sshll.u32 [#allocation2], 4
      %s40 = int_to_ptr.vmem [resolvable:$true] %s39
      %45 = dma.hbm_to_vmem [thread:$0]  %s7, 1024, %s40, [#allocation3], 128, 128, 8
    $region33: #{tpu_custom_call.1} parent=1 // pred_fallthru
      _
    // Predicated region
    $region34: #{tpu_custom_call.1} parent=1 // pred_check
      _
    $region35: #{tpu_custom_call.1} parent=1 // pred_check_branch
      %47 = sbr.rel (0) target = $region37
    $region36: #{tpu_custom_call.1} parent=1 // pred_region
      _
    $region37: #{tpu_custom_call.1} parent=1 // pred_fallthru
      _
    // Predicated region
    $region38: #{tpu_custom_call.1} parent=1 // pred_check
      _
    $region39: #{tpu_custom_call.1} parent=1 // pred_check_branch
      %49 = sbr.rel (0) target = $region41
    $region40: #{tpu_custom_call.1} parent=1 // pred_region
      %s51 = ssub.s32 1024, 1024
      %52 = vsyncadd [#allocation5], %s51
      %s53 = sshll.u32 [#allocation4], 4
      %s54 = int_to_ptr.vmem [resolvable:$true] %s53
      %59 = dma.hbm_to_vmem [thread:$0]  %s9, 1024, %s54, [#allocation5], 128, 128, 8
    $region41: #{tpu_custom_call.1} parent=1 // pred_fallthru
      _
    // Predicated region
    $region42: #{tpu_custom_call.1} parent=1 // pred_check
      _
    $region43: #{tpu_custom_call.1} parent=1 // pred_check_branch
      %61 = sbr.rel (0) target = $region45
    $region44: #{tpu_custom_call.1} parent=1 // pred_region
      _
    $region45: #{tpu_custom_call.1} parent=1 // pred_fallthru
      _
    // Predicated region
    $region46: #{tpu_custom_call.1} parent=1 // pred_check
      _
    $region47: #{tpu_custom_call.1} parent=1 // pred_check_branch
      %63 = sbr.rel (0) target = $region49
    $region48: #{tpu_custom_call.1} parent=1 // pred_region
      _
    $region49: #{tpu_custom_call.1} parent=1 // pred_fallthru
      _
    // Predicated region
    $region50: #{tpu_custom_call.1} parent=1 // pred_check
      _
    $region51: #{tpu_custom_call.1} parent=1 // pred_check_branch
      %65 = sbr.rel (0) target = $region53
    $region52: #{tpu_custom_call.1} parent=1 // pred_region
      _
    $region53: #{tpu_custom_call.1} parent=1 // pred_fallthru
      _
    // Predicated region
    $region54: #{tpu_custom_call.1} parent=1 // pred_check
      _
    $region55: #{tpu_custom_call.1} parent=1 // pred_check_branch
      %67 = sbr.rel (0) target = $region57
    $region56: #{tpu_custom_call.1} parent=1 // pred_region
      %68 = dma.done [#allocation3], 1024
    $region57: #{tpu_custom_call.1} parent=1 // pred_fallthru
      _
    // Predicated region
    $region58: #{tpu_custom_call.1} parent=1 // pred_check
      _
    $region59: #{tpu_custom_call.1} parent=1 // pred_check_branch
      %70 = sbr.rel (0) target = $region61
    $region60: #{tpu_custom_call.1} parent=1 // pred_region
      %71 = dma.done [#allocation5], 1024
    $region61: #{tpu_custom_call.1} parent=1 // pred_fallthru
      _
    %v72 = vld [vmem:[%s0] sm:$0xff]
    %v73 = vld [vmem:[%s0 + $0x8] sm:$0xff]
    %v74 = vld [vmem:[%s1] sm:$0xff]
    %v75 = vld [vmem:[%s2] sm:$0x1]
    %v77 = vlaneseq
    %v78 = vshrl.u32 %v77, 7
    %v79 = vsub.s32 0, %v78
    %v80 = vrot.slane %v75, %v79
    %vm82 = vcmask 64512
    %v84 = vsel %vm82, %v72, 0
    %v87 = vsel %vm82, %v73, 0
    %89 = vmatprep.subr.mxu0 0.0
    %90 = vmatpush1.msra.mxu0 %v74
    %91 = vmatprep.subr.mxu0 0.0
    %92 = vmatpush1.msra.mxu0 0.0
    %93 = vmatprep.subr.mxu0 0.0
    %94 = vmatpush1.msra.mxu0 0.0
    %95 = vmatprep.subr.mxu0 0.0
    %96 = vmatpush1.msra.mxu0 0.0
    %97 = vmatprep.subr.mxu0 0.0
    %98 = vmatpush1.msra.mxu0 0.0
    %99 = vmatprep.subr.mxu0 0.0
    %100 = vmatpush1.msra.mxu0 0.0
    %101 = vmatprep.subr.mxu0 0.0
    %102 = vmatpush1.msra.mxu0 0.0
    %103 = vmatprep.subr.mxu0 0.0
    %104 = vmatpush1.msra.mxu0 0.0
    %105 = vmatprep.subr.mxu0 0.0
    %106 = vmatpush1.msra.mxu0 0.0
    %107 = vmatprep.subr.mxu0 0.0
    %108 = vmatpush1.msra.mxu0 0.0
    %109 = vmatprep.subr.mxu0 0.0
    %110 = vmatpush1.msra.mxu0 0.0
    %111 = vmatprep.subr.mxu0 0.0
    %112 = vmatpush1.msra.mxu0 0.0
    %113 = vmatprep.subr.mxu0 0.0
    %114 = vmatpush1.msra.mxu0 0.0
    %115 = vmatprep.subr.mxu0 0.0
    %116 = vmatpush1.msra.mxu0 0.0
    %117 = vmatprep.subr.mxu0 0.0
    %118 = vmatpush1.msra.mxu0 0.0
    %119 = vmatprep.subr.mxu0 0.0
    %120 = vmatpush1.msra.mxu0 0.0
    %121 = vmatprep.subr.mxu0 0.0
    %122 = vmatpush1.msra.mxu0 0.0
    %123 = vmatprep.subr.mxu0 0.0
    %124 = vmatpush1.msra.mxu0 0.0
    %125 = vmatprep.subr.mxu0 0.0
    %126 = vmatpush1.msra.mxu0 0.0
    %127 = vmatprep.subr.mxu0 0.0
    %128 = vmatpush1.msra.mxu0 0.0
    %129 = vmatprep.subr.mxu0 0.0
    %130 = vmatpush1.msra.mxu0 0.0
    %131 = vmatprep.subr.mxu0 0.0
    %132 = vmatpush1.msra.mxu0 0.0
    %133 = vmatprep.subr.mxu0 0.0
    %134 = vmatpush1.msra.mxu0 0.0
    %135 = vmatprep.subr.mxu0 0.0
    %136 = vmatpush1.msra.mxu0 0.0
    %137 = vmatprep.subr.mxu0 0.0
    %138 = vmatpush1.msra.mxu0 0.0
    %139 = vmatprep.subr.mxu0 0.0
    %140 = vmatpush1.msra.mxu0 0.0
    %141 = vmatprep.subr.mxu0 0.0
    %142 = vmatpush1.msra.mxu0 0.0
    %143 = vmatprep.subr.mxu0 0.0
    %144 = vmatpush1.msra.mxu0 0.0
    %145 = vmatprep.subr.mxu0 0.0
    %146 = vmatpush1.msra.mxu0 0.0
    %147 = vmatprep.subr.mxu0 0.0
    %148 = vmatpush1.msra.mxu0 0.0
    %149 = vmatprep.subr.mxu0 0.0
    %150 = vmatpush1.msra.mxu0 0.0
    %151 = vmatprep.subr.mxu0 0.0
    %152 = vmatpush1.msra.mxu0 0.0
    %153 = vmatprep.mubr.f32.mxu0 0.0
    %154 = vmatmul.mubr.f32.gmra.mrb[0].mxu0 %v84
    %v155 = vpop.f32.mrb[0].mxu0
    %v156 = vadd.f32 %v80, %v155
    %v157 = vpop.f32.mrb[0].mxu0
    %158 = vmatprep.mubr.f32.mxu0 0.0
    %159 = vmatmul.mubr.f32.gmra.mrb[0].mxu0 %v87
    %v160 = vpop.f32.mrb[0].mxu0
    %v161 = vadd.f32 %v80, %v160
    %v162 = vpop.f32.mrb[0].mxu0
    %163 = vdwg.mxu0
    %v164 = vmax.f32 %v156, 0.0
    %v165 = vmax.f32 %v161, 0.0
    %v166 = vld [vmem:[%s3] sm:$0xff]
    %v167 = vld [vmem:[%s3 + $0x8] sm:$0xff]
    %v168 = vld [vmem:[%s3 + $0x10] sm:$0xff]
    %v169 = vld [vmem:[%s3 + $0x18] sm:$0xff]
    %v170 = vld [vmem:[%s3 + $0x20] sm:$0xff]
    %v171 = vld [vmem:[%s3 + $0x28] sm:$0xff]
    %v172 = vld [vmem:[%s3 + $0x30] sm:$0xff]
    %v173 = vld [vmem:[%s3 + $0x38] sm:$0xff]
    %v174 = vld [vmem:[%s4] sm:$0x1]
    %v176 = vlaneseq
    %v177 = vshrl.u32 %v176, 7
    %v178 = vsub.s32 0, %v177
    %v179 = vrot.slane %v174, %v178
    %vm181 = vcmask 523264
    %v183 = vsel %vm181, %v164, 0
    %v186 = vsel %vm181, %v165, 0
    %188 = vmatprep.subr.mxu0 0.0
    %189 = vmatpush1.msra.mxu0 %v166
    %190 = vmatprep.subr.mxu0 0.0
    %191 = vmatpush1.msra.mxu0 %v167
    %192 = vmatprep.subr.mxu0 0.0
    %193 = vmatpush1.msra.mxu0 %v168
    %194 = vmatprep.subr.mxu0 0.0
    %195 = vmatpush1.msra.mxu0 %v169
    %196 = vmatprep.subr.mxu0 0.0
    %197 = vmatpush1.msra.mxu0 %v170
    %198 = vmatprep.subr.mxu0 0.0
    %199 = vmatpush1.msra.mxu0 %v171
    %200 = vmatprep.subr.mxu0 0.0
    %201 = vmatpush1.msra.mxu0 %v172
    %202 = vmatprep.subr.mxu0 0.0
    %203 = vmatpush1.msra.mxu0 %v173
    %204 = vmatprep.subr.mxu0 0.0
    %205 = vmatpush1.msra.mxu0 0.0
    %206 = vmatprep.subr.mxu0 0.0
    %207 = vmatpush1.msra.mxu0 0.0
    %208 = vmatprep.subr.mxu0 0.0
    %209 = vmatpush1.msra.mxu0 0.0
    %210 = vmatprep.subr.mxu0 0.0
    %211 = vmatpush1.msra.mxu0 0.0
    %212 = vmatprep.subr.mxu0 0.0
    %213 = vmatpush1.msra.mxu0 0.0
    %214 = vmatprep.subr.mxu0 0.0
    %215 = vmatpush1.msra.mxu0 0.0
    %216 = vmatprep.subr.mxu0 0.0
    %217 = vmatpush1.msra.mxu0 0.0
    %218 = vmatprep.subr.mxu0 0.0
    %219 = vmatpush1.msra.mxu0 0.0
    %220 = vmatprep.subr.mxu0 0.0
    %221 = vmatpush1.msra.mxu0 0.0
    %222 = vmatprep.subr.mxu0 0.0
    %223 = vmatpush1.msra.mxu0 0.0
    %224 = vmatprep.subr.mxu0 0.0
    %225 = vmatpush1.msra.mxu0 0.0
    %226 = vmatprep.subr.mxu0 0.0
    %227 = vmatpush1.msra.mxu0 0.0
    %228 = vmatprep.subr.mxu0 0.0
    %229 = vmatpush1.msra.mxu0 0.0
    %230 = vmatprep.subr.mxu0 0.0
    %231 = vmatpush1.msra.mxu0 0.0
    %232 = vmatprep.subr.mxu0 0.0
    %233 = vmatpush1.msra.mxu0 0.0
    %234 = vmatprep.subr.mxu0 0.0
    %235 = vmatpush1.msra.mxu0 0.0
    %236 = vmatprep.subr.mxu0 0.0
    %237 = vmatpush1.msra.mxu0 0.0
    %238 = vmatprep.subr.mxu0 0.0
    %239 = vmatpush1.msra.mxu0 0.0
    %240 = vmatprep.subr.mxu0 0.0
    %241 = vmatpush1.msra.mxu0 0.0
    %242 = vmatprep.subr.mxu0 0.0
    %243 = vmatpush1.msra.mxu0 0.0
    %244 = vmatprep.subr.mxu0 0.0
    %245 = vmatpush1.msra.mxu0 0.0
    %246 = vmatprep.subr.mxu0 0.0
    %247 = vmatpush1.msra.mxu0 0.0
    %248 = vmatprep.subr.mxu0 0.0
    %249 = vmatpush1.msra.mxu0 0.0
    %250 = vmatprep.subr.mxu0 0.0
    %251 = vmatpush1.msra.mxu0 0.0
    %252 = vmatprep.mubr.f32.mxu0 0.0
    %253 = vmatmul.mubr.f32.gmra.mrb[0].mxu0 %v183
    %v254 = vpop.f32.mrb[0].mxu0
    %v255 = vadd.f32 %v179, %v254
    %v256 = vpop.f32.mrb[0].mxu0
    %257 = vmatprep.mubr.f32.mxu0 0.0
    %258 = vmatmul.mubr.f32.gmra.mrb[0].mxu0 %v186
    %v259 = vpop.f32.mrb[0].mxu0
    %v260 = vadd.f32 %v179, %v259
    %v261 = vpop.f32.mrb[0].mxu0
    %262 = vdwg.mxu0
    %v263 = vsel %vm181, %v255, 0.0
    %264 = vadd.xlane.f32.xlu0 %v263
    %v265 = vpop.xlane.xlu0 %264
    %v266 = vsel %vm181, %v260, 0.0
    %267 = vadd.xlane.f32.xlu0 %v266
    %v268 = vpop.xlane.xlu0 %267
    %v269 = vrcp.pop 64.0
    %v270 = vmul.f32 %v265, %v269
    %v271 = vmul.f32 %v268, %v269
    %v272 = vsub.f32 %v255, %v270
    %v273 = vsub.f32 %v260, %v271
    %v274 = vmul.f32 %v272, %v272
    %v275 = vmul.f32 %v273, %v273
    %v276 = vsel %vm181, %v274, 0.0
    %277 = vadd.xlane.f32.xlu0 %v276
    %v278 = vpop.xlane.xlu0 %277
    %v279 = vsel %vm181, %v275, 0.0
    %280 = vadd.xlane.f32.xlu0 %v279
    %v281 = vpop.xlane.xlu0 %280
    %v282 = vmul.f32 %v278, %v269
    %v283 = vmul.f32 %v281, %v269
    %v284 = vadd.f32 %v282, 1e-05
    %v285 = vadd.f32 %v283, 1e-05
    %v286 = vrsqrt.pop %v284
    %v287 = vrsqrt.pop %v285
    %v288 = vmul.f32 %v272, %v286
    %v289 = vmul.f32 %v273, %v287
    %v290 = vld [vmem:[%s5] sm:$0x1]
    %v292 = vlaneseq
    %v293 = vshrl.u32 %v292, 7
    %v294 = vsub.s32 0, %v293
    %v295 = vrot.slane %v290, %v294
    %v297 = vmul.f32 %v288, %v295
    %v298 = vmul.f32 %v289, %v295
    %v299 = vld [vmem:[%s6] sm:$0x1]
    %v301 = vlaneseq
    %v302 = vshrl.u32 %v301, 7
    %v303 = vsub.s32 0, %v302
    %v304 = vrot.slane %v299, %v303
    %v306 = vadd.f32 %v297, %v304
    %v307 = vadd.f32 %v298, %v304
    %v308 = vtanh.pop %v306
    %v309 = vtanh.pop %v307
    %v310 = vld [vmem:[#allocation2] sm:$0xff]
    %v311 = vld [vmem:[#allocation2 + $0x8] sm:$0xff]
    %v312 = vld [vmem:[#allocation2 + $0x10] sm:$0xff]
    %v313 = vld [vmem:[#allocation2 + $0x18] sm:$0xff]
    %v314 = vld [vmem:[#allocation2 + $0x20] sm:$0xff]
    %v315 = vld [vmem:[#allocation2 + $0x28] sm:$0xff]
    %v316 = vld [vmem:[#allocation2 + $0x30] sm:$0xff]
    %v317 = vld [vmem:[#allocation2 + $0x38] sm:$0xff]
    %v318 = vld [vmem:[%s8] sm:$0x1]
    %v320 = vlaneseq
    %v321 = vshrl.u32 %v320, 7
    %v322 = vsub.s32 0, %v321
    %v323 = vrot.slane %v318, %v322
    %v326 = vsel %vm181, %v308, 0
    %v329 = vsel %vm181, %v309, 0
    %331 = vmatprep.subr.mxu0 0.0
    %332 = vmatpush1.msra.mxu0 %v310
    %333 = vmatprep.subr.mxu0 0.0
    %334 = vmatpush1.msra.mxu0 %v311
    %335 = vmatprep.subr.mxu0 0.0
    %336 = vmatpush1.msra.mxu0 %v312
    %337 = vmatprep.subr.mxu0 0.0
    %338 = vmatpush1.msra.mxu0 %v313
    %339 = vmatprep.subr.mxu0 0.0
    %340 = vmatpush1.msra.mxu0 %v314
    %341 = vmatprep.subr.mxu0 0.0
    %342 = vmatpush1.msra.mxu0 %v315
    %343 = vmatprep.subr.mxu0 0.0
    %344 = vmatpush1.msra.mxu0 %v316
    %345 = vmatprep.subr.mxu0 0.0
    %346 = vmatpush1.msra.mxu0 %v317
    %347 = vmatprep.subr.mxu0 0.0
    %348 = vmatpush1.msra.mxu0 0.0
    %349 = vmatprep.subr.mxu0 0.0
    %350 = vmatpush1.msra.mxu0 0.0
    %351 = vmatprep.subr.mxu0 0.0
    %352 = vmatpush1.msra.mxu0 0.0
    %353 = vmatprep.subr.mxu0 0.0
    %354 = vmatpush1.msra.mxu0 0.0
    %355 = vmatprep.subr.mxu0 0.0
    %356 = vmatpush1.msra.mxu0 0.0
    %357 = vmatprep.subr.mxu0 0.0
    %358 = vmatpush1.msra.mxu0 0.0
    %359 = vmatprep.subr.mxu0 0.0
    %360 = vmatpush1.msra.mxu0 0.0
    %361 = vmatprep.subr.mxu0 0.0
    %362 = vmatpush1.msra.mxu0 0.0
    %363 = vmatprep.subr.mxu0 0.0
    %364 = vmatpush1.msra.mxu0 0.0
    %365 = vmatprep.subr.mxu0 0.0
    %366 = vmatpush1.msra.mxu0 0.0
    %367 = vmatprep.subr.mxu0 0.0
    %368 = vmatpush1.msra.mxu0 0.0
    %369 = vmatprep.subr.mxu0 0.0
    %370 = vmatpush1.msra.mxu0 0.0
    %371 = vmatprep.subr.mxu0 0.0
    %372 = vmatpush1.msra.mxu0 0.0
    %373 = vmatprep.subr.mxu0 0.0
    %374 = vmatpush1.msra.mxu0 0.0
    %375 = vmatprep.subr.mxu0 0.0
    %376 = vmatpush1.msra.mxu0 0.0
    %377 = vmatprep.subr.mxu0 0.0
    %378 = vmatpush1.msra.mxu0 0.0
    %379 = vmatprep.subr.mxu0 0.0
    %380 = vmatpush1.msra.mxu0 0.0
    %381 = vmatprep.subr.mxu0 0.0
    %382 = vmatpush1.msra.mxu0 0.0
    %383 = vmatprep.subr.mxu0 0.0
    %384 = vmatpush1.msra.mxu0 0.0
    %385 = vmatprep.subr.mxu0 0.0
    %386 = vmatpush1.msra.mxu0 0.0
    %387 = vmatprep.subr.mxu0 0.0
    %388 = vmatpush1.msra.mxu0 0.0
    %389 = vmatprep.subr.mxu0 0.0
    %390 = vmatpush1.msra.mxu0 0.0
    %391 = vmatprep.subr.mxu0 0.0
    %392 = vmatpush1.msra.mxu0 0.0
    %393 = vmatprep.subr.mxu0 0.0
    %394 = vmatpush1.msra.mxu0 0.0
    %395 = vmatprep.mubr.f32.mxu0 0.0
    %396 = vmatmul.mubr.f32.gmra.mrb[0].mxu0 %v326
    %v397 = vpop.f32.mrb[0].mxu0
    %v398 = vadd.f32 %v323, %v397
    %v399 = vpop.f32.mrb[0].mxu0
    %400 = vmatprep.mubr.f32.mxu0 0.0
    %401 = vmatmul.mubr.f32.gmra.mrb[0].mxu0 %v329
    %v402 = vpop.f32.mrb[0].mxu0
    %v403 = vadd.f32 %v323, %v402
    %v404 = vpop.f32.mrb[0].mxu0
    %405 = vdwg.mxu0
    %v406 = vmax.f32 %v398, 0.0
    %v407 = vmax.f32 %v403, 0.0
    %v408 = vld [vmem:[#allocation4] sm:$0xff]
    %v409 = vld [vmem:[#allocation4 + $0x8] sm:$0xff]
    %v410 = vld [vmem:[#allocation4 + $0x10] sm:$0xff]
    %v411 = vld [vmem:[#allocation4 + $0x18] sm:$0xff]
    %v412 = vld [vmem:[#allocation4 + $0x20] sm:$0xff]
    %v413 = vld [vmem:[#allocation4 + $0x28] sm:$0xff]
    %v414 = vld [vmem:[#allocation4 + $0x30] sm:$0xff]
    %v415 = vld [vmem:[#allocation4 + $0x38] sm:$0xff]
    %v416 = vld [vmem:[%s10] sm:$0x1]
    %v418 = vlaneseq
    %v419 = vshrl.u32 %v418, 7
    %v420 = vsub.s32 0, %v419
    %v421 = vrot.slane %v416, %v420
    %v424 = vsel %vm181, %v406, 0
    %v427 = vsel %vm181, %v407, 0
    %429 = vmatprep.subr.mxu0 0.0
    %430 = vmatpush1.msra.mxu0 %v408
    %431 = vmatprep.subr.mxu0 0.0
    %432 = vmatpush1.msra.mxu0 %v409
    %433 = vmatprep.subr.mxu0 0.0
    %434 = vmatpush1.msra.mxu0 %v410
    %435 = vmatprep.subr.mxu0 0.0
    %436 = vmatpush1.msra.mxu0 %v411
    %437 = vmatprep.subr.mxu0 0.0
    %438 = vmatpush1.msra.mxu0 %v412
    %439 = vmatprep.subr.mxu0 0.0
    %440 = vmatpush1.msra.mxu0 %v413
    %441 = vmatprep.subr.mxu0 0.0
    %442 = vmatpush1.msra.mxu0 %v414
    %443 = vmatprep.subr.mxu0 0.0
    %444 = vmatpush1.msra.mxu0 %v415
    %445 = vmatprep.subr.mxu0 0.0
    %446 = vmatpush1.msra.mxu0 0.0
    %447 = vmatprep.subr.mxu0 0.0
    %448 = vmatpush1.msra.mxu0 0.0
    %449 = vmatprep.subr.mxu0 0.0
    %450 = vmatpush1.msra.mxu0 0.0
    %451 = vmatprep.subr.mxu0 0.0
    %452 = vmatpush1.msra.mxu0 0.0
    %453 = vmatprep.subr.mxu0 0.0
    %454 = vmatpush1.msra.mxu0 0.0
    %455 = vmatprep.subr.mxu0 0.0
    %456 = vmatpush1.msra.mxu0 0.0
    %457 = vmatprep.subr.mxu0 0.0
    %458 = vmatpush1.msra.mxu0 0.0
    %459 = vmatprep.subr.mxu0 0.0
    %460 = vmatpush1.msra.mxu0 0.0
    %461 = vmatprep.subr.mxu0 0.0
    %462 = vmatpush1.msra.mxu0 0.0
    %463 = vmatprep.subr.mxu0 0.0
    %464 = vmatpush1.msra.mxu0 0.0
    %465 = vmatprep.subr.mxu0 0.0
    %466 = vmatpush1.msra.mxu0 0.0
    %467 = vmatprep.subr.mxu0 0.0
    %468 = vmatpush1.msra.mxu0 0.0
    %469 = vmatprep.subr.mxu0 0.0
    %470 = vmatpush1.msra.mxu0 0.0
    %471 = vmatprep.subr.mxu0 0.0
    %472 = vmatpush1.msra.mxu0 0.0
    %473 = vmatprep.subr.mxu0 0.0
    %474 = vmatpush1.msra.mxu0 0.0
    %475 = vmatprep.subr.mxu0 0.0
    %476 = vmatpush1.msra.mxu0 0.0
    %477 = vmatprep.subr.mxu0 0.0
    %478 = vmatpush1.msra.mxu0 0.0
    %479 = vmatprep.subr.mxu0 0.0
    %480 = vmatpush1.msra.mxu0 0.0
    %481 = vmatprep.subr.mxu0 0.0
    %482 = vmatpush1.msra.mxu0 0.0
    %483 = vmatprep.subr.mxu0 0.0
    %484 = vmatpush1.msra.mxu0 0.0
    %485 = vmatprep.subr.mxu0 0.0
    %486 = vmatpush1.msra.mxu0 0.0
    %487 = vmatprep.subr.mxu0 0.0
    %488 = vmatpush1.msra.mxu0 0.0
    %489 = vmatprep.subr.mxu0 0.0
    %490 = vmatpush1.msra.mxu0 0.0
    %491 = vmatprep.subr.mxu0 0.0
    %492 = vmatpush1.msra.mxu0 0.0
    %493 = vmatprep.mubr.f32.mxu0 0.0
    %494 = vmatmul.mubr.f32.gmra.mrb[0].mxu0 %v424
    %v495 = vpop.f32.mrb[0].mxu0
    %v496 = vadd.f32 %v421, %v495
    %v497 = vpop.f32.mrb[0].mxu0
    %498 = vmatprep.mubr.f32.mxu0 0.0
    %499 = vmatmul.mubr.f32.gmra.mrb[0].mxu0 %v427
    %v500 = vpop.f32.mrb[0].mxu0
    %v501 = vadd.f32 %v421, %v500
    %v502 = vpop.f32.mrb[0].mxu0
    %503 = vdwg.mxu0
    %v504 = vmax.f32 %v496, 0.0
    %v505 = vmax.f32 %v501, 0.0
    %v506 = vld [vmem:[%s11] sm:$0xff]
    %v507 = vld [vmem:[%s11 + $0x8] sm:$0xff]
    %v508 = vld [vmem:[%s11 + $0x10] sm:$0xff]
    %v509 = vld [vmem:[%s11 + $0x18] sm:$0xff]
    %v510 = vld [vmem:[%s11 + $0x20] sm:$0xff]
    %v511 = vld [vmem:[%s11 + $0x28] sm:$0xff]
    %v512 = vld [vmem:[%s11 + $0x30] sm:$0xff]
    %v513 = vld [vmem:[%s11 + $0x38] sm:$0xff]
    %v514 = vld [vmem:[%s12] sm:$0x1]
    %v516 = vlaneseq
    %v517 = vshrl.u32 %v516, 7
    %v518 = vsub.s32 0, %v517
    %v519 = vrot.slane %v514, %v518
    %v522 = vsel %vm181, %v504, 0
    %v525 = vsel %vm181, %v505, 0
    %527 = vmatprep.subr.mxu0 0.0
    %528 = vmatpush1.msra.mxu0 %v506
    %529 = vmatprep.subr.mxu0 0.0
    %530 = vmatpush1.msra.mxu0 %v507
    %531 = vmatprep.subr.mxu0 0.0
    %532 = vmatpush1.msra.mxu0 %v508
    %533 = vmatprep.subr.mxu0 0.0
    %534 = vmatpush1.msra.mxu0 %v509
    %535 = vmatprep.subr.mxu0 0.0
    %536 = vmatpush1.msra.mxu0 %v510
    %537 = vmatprep.subr.mxu0 0.0
    %538 = vmatpush1.msra.mxu0 %v511
    %539 = vmatprep.subr.mxu0 0.0
    %540 = vmatpush1.msra.mxu0 %v512
    %541 = vmatprep.subr.mxu0 0.0
    %542 = vmatpush1.msra.mxu0 %v513
    %543 = vmatprep.subr.mxu0 0.0
    %544 = vmatpush1.msra.mxu0 0.0
    %545 = vmatprep.subr.mxu0 0.0
    %546 = vmatpush1.msra.mxu0 0.0
    %547 = vmatprep.subr.mxu0 0.0
    %548 = vmatpush1.msra.mxu0 0.0
    %549 = vmatprep.subr.mxu0 0.0
    %550 = vmatpush1.msra.mxu0 0.0
    %551 = vmatprep.subr.mxu0 0.0
    %552 = vmatpush1.msra.mxu0 0.0
    %553 = vmatprep.subr.mxu0 0.0
    %554 = vmatpush1.msra.mxu0 0.0
    %555 = vmatprep.subr.mxu0 0.0
    %556 = vmatpush1.msra.mxu0 0.0
    %557 = vmatprep.subr.mxu0 0.0
    %558 = vmatpush1.msra.mxu0 0.0
    %559 = vmatprep.subr.mxu0 0.0
    %560 = vmatpush1.msra.mxu0 0.0
    %561 = vmatprep.subr.mxu0 0.0
    %562 = vmatpush1.msra.mxu0 0.0
    %563 = vmatprep.subr.mxu0 0.0
    %564 = vmatpush1.msra.mxu0 0.0
    %565 = vmatprep.subr.mxu0 0.0
    %566 = vmatpush1.msra.mxu0 0.0
    %567 = vmatprep.subr.mxu0 0.0
    %568 = vmatpush1.msra.mxu0 0.0
    %569 = vmatprep.subr.mxu0 0.0
    %570 = vmatpush1.msra.mxu0 0.0
    %571 = vmatprep.subr.mxu0 0.0
    %572 = vmatpush1.msra.mxu0 0.0
    %573 = vmatprep.subr.mxu0 0.0
    %574 = vmatpush1.msra.mxu0 0.0
    %575 = vmatprep.subr.mxu0 0.0
    %576 = vmatpush1.msra.mxu0 0.0
    %577 = vmatprep.subr.mxu0 0.0
    %578 = vmatpush1.msra.mxu0 0.0
    %579 = vmatprep.subr.mxu0 0.0
    %580 = vmatpush1.msra.mxu0 0.0
    %581 = vmatprep.subr.mxu0 0.0
    %582 = vmatpush1.msra.mxu0 0.0
    %583 = vmatprep.subr.mxu0 0.0
    %584 = vmatpush1.msra.mxu0 0.0
    %585 = vmatprep.subr.mxu0 0.0
    %586 = vmatpush1.msra.mxu0 0.0
    %587 = vmatprep.subr.mxu0 0.0
    %588 = vmatpush1.msra.mxu0 0.0
    %589 = vmatprep.subr.mxu0 0.0
    %590 = vmatpush1.msra.mxu0 0.0
    %591 = vmatprep.mubr.f32.mxu0 0.0
    %592 = vmatmul.mubr.f32.gmra.mrb[0].mxu0 %v522
    %v593 = vpop.f32.mrb[0].mxu0
    %v594 = vadd.f32 %v519, %v593
    %v595 = vpop.f32.mrb[0].mxu0
    %596 = vmatprep.mubr.f32.mxu0 0.0
    %597 = vmatmul.mubr.f32.gmra.mrb[0].mxu0 %v525
    %v598 = vpop.f32.mrb[0].mxu0
    %v599 = vadd.f32 %v519, %v598
    %v600 = vpop.f32.mrb[0].mxu0
    %601 = vdwg.mxu0
    %vm602 = vcmask 15360
    %603 = vst.msk [vmem:[%s13] sm:$0xff] %vm602, %v594
    %604 = vst.msk [vmem:[%s13 + $0x8] sm:$0xff] %vm602, %v599
    // Predicated region
    $region62: #{tpu_custom_call.1} parent=1 // pred_check
      _
    $region63: #{tpu_custom_call.1} parent=1 // pred_check_branch
      %606 = sbr.rel (0) target = $region65
    $region64: #{tpu_custom_call.1} parent=1 // pred_region
      _
    $region65: #{tpu_custom_call.1} parent=1 // pred_fallthru
      _
    // Predicated region
    $region66: #{tpu_custom_call.1} parent=1 // pred_check
      _
    $region67: #{tpu_custom_call.1} parent=1 // pred_check_branch
      %608 = sbr.rel (0) target = $region69
    $region68: #{tpu_custom_call.1} parent=1 // pred_region
      _
    $region69: #{tpu_custom_call.1} parent=1 // pred_fallthru
      _
    %609 = vsyncpa [#allocation3], 1
    %610 = vsyncpa [#allocation5], 1

</llo_original>
